<compile_context>
chip_gen: v7x
topology: tpu7x:2x2x1
jax: 0.10.0
libtpu: 0.0.40
codegen_flags: <defaults>
</compile_context>

<pallas_src>
import functools

import jax
import jax.numpy as jnp
from jax.experimental import pallas as pl
from jax.experimental.pallas import tpu as pltpu


def _round_up(x, m):
    return ((x + m - 1) // m) * m


def _mlp_kernel(n_layers, out_dims, x_ref, b_ref, *refs):
    """Fused MLP forward for one batch tile.

    refs = (w0, w1, ..., w_{L-1}, out_ref); weights are (in, out) = W.T.
    b_ref is the packed (n_layers, max_out) f32 bias buffer.
    Hidden layers use tanh; output layer is identity (matches the standard
    `mlp(sizes, activation)` helper with output_activation = nn.Identity).
    """
    w_refs = refs[:n_layers]
    out_ref = refs[n_layers]

    h = x_ref[...].astype(jnp.float32)
    for layer in range(n_layers):
        w = w_refs[layer][...]                       # bf16 (or f32) weights, VMEM-resident
        acc = jnp.dot(h.astype(w.dtype), w,          # bf16 MXU operands
                      preferred_element_type=jnp.float32)  # f32 accumulate
        acc = acc + b_ref[layer:layer + 1, :out_dims[layer]]  # f32 bias, broadcasts over rows
        h = jnp.tanh(acc) if layer < n_layers - 1 else acc    # f32 tanh on EUP
    out_ref[...] = h.astype(out_ref.dtype)


def prepare_policy_params(weights, biases, compute_dtype=jnp.bfloat16):
    """One-time parameter prep (do NOT redo per forward call).

    weights: list of W.T arrays (in_i, out_i)  -> cast to compute_dtype
    biases:  list of (out_i,) arrays           -> packed into one f32 buffer
    """
    n_layers = len(weights)
    max_out = max(int(w.shape[1]) for w in weights)
    w_list = tuple(jnp.asarray(w, compute_dtype) for w in weights)
    b_packed = jnp.zeros((n_layers, max_out), jnp.float32)
    for i, b in enumerate(biases):
        b_packed = b_packed.at[i, : b.shape[0]].set(b.astype(jnp.float32))
    return {"weights": w_list, "bias_packed": b_packed}


def deterministic_policy_forward(state, params):
    """Fused-MLP policy forward.

    state:  [batch, state_dim] float32
    params: output of prepare_policy_params
    returns [batch, action_dim] float32
    """
    weights = params["weights"]
    b_packed = params["bias_packed"]
    n_layers = len(weights)
    batch, state_dim = state.shape
    action_dim = int(weights[-1].shape[1])
    out_dims = tuple(int(w.shape[1]) for w in weights)

    # Batch tile: up to 256 rows per MXU pass (good M utilization for rollout
    # batches); granularity 16 so bf16 sublane packing is happy at small sizes.
    bt = min(256, _round_up(batch, 16))
    pad_b = _round_up(batch, bt)

    x = state.astype(jnp.float32)
    if pad_b != batch:
        x = jnp.pad(x, ((0, pad_b - batch), (0, 0)))

    grid = (pad_b // bt,)

    # x / out are tiled over the batch; weights + packed biases use a constant
    # block index (full-array blocks) so they stay resident in VMEM.
    in_specs = [
        pl.BlockSpec((bt, state_dim), lambda i: (i, 0)),
        pl.BlockSpec(b_packed.shape, lambda i: (0, 0)),
    ]
    for w in weights:
        in_specs.append(pl.BlockSpec(tuple(w.shape), lambda i: (0, 0)))
    out_spec = pl.BlockSpec((bt, action_dim), lambda i: (i, 0))

    flops = 2 * sum(pad_b * int(w.shape[0]) * int(w.shape[1]) for w in weights)
    transcendentals = pad_b * sum(out_dims[:-1])          # tanh on hidden layers
    bytes_accessed = (
        x.size * x.dtype.itemsize
        + sum(w.size * w.dtype.itemsize for w in weights)
        + b_packed.size * b_packed.dtype.itemsize
        + pad_b * action_dim * 4
    )

    out = pl.pallas_call(
        functools.partial(_mlp_kernel, n_layers, out_dims),
        out_shape=jax.ShapeDtypeStruct((pad_b, action_dim), jnp.float32),
        grid=grid,
        in_specs=in_specs,
        out_specs=out_spec,
        compiler_params=pltpu.CompilerParams(
            dimension_semantics=("parallel",),   # shard batch tiles across TCs (v7x)
        ),
        cost_estimate=pl.CostEstimate(
            flops=flops,
            transcendentals=transcendentals,
            bytes_accessed=bytes_accessed,
        ),
    )(x, b_packed, *weights)

    return out[:batch]


def init_policy_params(key, state_dim, action_dim, hidden_sizes):
    """Parameter init mirroring DeterministicPolicy.__init__.

    Hidden layers: PyTorch default Linear init (uniform +/- 1/sqrt(fan_in)).
    Last layer (out_features == action_dim): uniform(-0.005, 0.005) for both
    weight and bias, per init_last_layer_weights.
    Weights returned already transposed to (in, out).
    """
    sizes = [state_dim] + list(hidden_sizes) + [action_dim]
    weights, biases = [], []
    for i in range(len(sizes) - 1):
        in_d, out_d = sizes[i], sizes[i + 1]
        key, kw, kb = jax.random.split(key, 3)
        bound = 0.005 if i == len(sizes) - 2 else 1.0 / jnp.sqrt(float(in_d))
        w = jax.random.uniform(kw, (in_d, out_d), jnp.float32, -bound, bound)
        b = jax.random.uniform(kb, (out_d,), jnp.float32, -bound, bound)
        weights.append(w)
        biases.append(b)
    return weights, biases


def _reference_forward(state, weights, biases):
    h = state
    for i, (w, b) in enumerate(zip(weights, biases)):
        h = h @ w + b
        if i < len(weights) - 1:
            h = jnp.tanh(h)
    return h


if __name__ == "__main__":
    key = jax.random.PRNGKey(0)
    state_dim, action_dim = 4, 2
    hidden_sizes = (32, 32)

    key, k_params = jax.random.split(key)
    weights, biases = init_policy_params(k_params, state_dim, action_dim, hidden_sizes)
    params = prepare_policy_params(weights, biases)  # one-time bf16 cast + bias pack

    # small batch (single grid step)
    key, k1 = jax.random.split(key)
    state_small = jax.random.normal(k1, (2, state_dim), jnp.float32)
    out_small = jax.block_until_ready(deterministic_policy_forward(state_small, params))
    ref_small = _reference_forward(state_small, weights, biases)
    assert out_small.shape == (2, action_dim)
    # bf16 MXU operands with f32 accumulation -> compare with bf16-level tolerance
    assert jnp.allclose(out_small, ref_small, atol=2e-3, rtol=2e-2)

    # larger batch (exercises the batch-tiled grid + padding path)
    key, k2 = jax.random.split(key)
    state_big = jax.random.normal(k2, (300, state_dim), jnp.float32)
    out_big = jax.block_until_ready(deterministic_policy_forward(state_big, params))
    ref_big = _reference_forward(state_big, weights, biases)
    assert out_big.shape == (300, action_dim)
    assert jnp.allclose(out_big, ref_big, atol=2e-3, rtol=2e-2)

    print("KERNEL_OK")
</pallas_src>

<mosaic_0001>
module attributes {stable_mosaic.version = 11 : i64} {
  func.func @_mlp_kernel(%arg0: i32, %arg1: memref<16x4xf32, #tpu.memory_space<vmem>>, %arg2: memref<3x32xf32, #tpu.memory_space<vmem>>, %arg3: memref<4x32xbf16, #tpu.memory_space<vmem>>, %arg4: memref<32x32xbf16, #tpu.memory_space<vmem>>, %arg5: memref<32x2xbf16, #tpu.memory_space<vmem>>, %arg6: memref<16x2xf32, #tpu.memory_space<vmem>>) attributes {dimension_semantics = [#tpu.dimension_semantics<parallel>], iteration_bounds = array<i64: 1>, scalar_prefetch = 0 : i64, scratch_operands = 0 : i64, tpu.core_type = #tpu.core_type<tc>, window_params = [{transform_indices = @transform_0, window_bounds = array<i64: 16, 4>}, {pipeline_mode = #tpu.pipeline_mode<synchronous>, transform_indices = @transform_1, window_bounds = array<i64: 3, 32>}, {pipeline_mode = #tpu.pipeline_mode<synchronous>, transform_indices = @transform_2, window_bounds = array<i64: 4, 32>}, {pipeline_mode = #tpu.pipeline_mode<synchronous>, transform_indices = @transform_3, window_bounds = array<i64: 32, 32>}, {pipeline_mode = #tpu.pipeline_mode<synchronous>, transform_indices = @transform_4, window_bounds = array<i64: 32, 2>}, {transform_indices = @transform_5, window_bounds = array<i64: 16, 2>}]} {
    %c0 = arith.constant 0 : index
    %c0_0 = arith.constant 0 : index
    %0 = vector.load %arg1[%c0, %c0_0] : memref<16x4xf32, #tpu.memory_space<vmem>>, vector<16x4xf32>
    %c0_1 = arith.constant 0 : index
    %c0_2 = arith.constant 0 : index
    %1 = vector.load %arg3[%c0_1, %c0_2] : memref<4x32xbf16, #tpu.memory_space<vmem>>, vector<4x32xbf16>
    %2 = arith.truncf %0 : vector<16x4xf32> to vector<16x4xbf16>
    %cst = arith.constant dense<0.000000e+00> : vector<16x32xf32>
    %3 = tpu.matmul %2, %1, %cst {dimension_numbers = #tpu.dot_dimension_numbers<[1], [0], [0], [1], [0, 0, 1, 1], [], []>} : vector<16x4xbf16>, vector<4x32xbf16>, vector<16x32xf32> -> vector<16x32xf32>
    %c0_3 = arith.constant 0 : index
    %c0_4 = arith.constant 0 : index
    %4 = vector.load %arg2[%c0_3, %c0_4] : memref<3x32xf32, #tpu.memory_space<vmem>>, vector<1x32xf32>
    %5 = vector.broadcast %4 : vector<1x32xf32> to vector<16x32xf32>
    %6 = arith.addf %3, %5 : vector<16x32xf32>
    %7 = math.tanh %6 : vector<16x32xf32>
    %c0_5 = arith.constant 0 : index
    %c0_6 = arith.constant 0 : index
    %8 = vector.load %arg4[%c0_5, %c0_6] : memref<32x32xbf16, #tpu.memory_space<vmem>>, vector<32x32xbf16>
    %9 = arith.truncf %7 : vector<16x32xf32> to vector<16x32xbf16>
    %cst_7 = arith.constant dense<0.000000e+00> : vector<16x32xf32>
    %10 = tpu.matmul %9, %8, %cst_7 {dimension_numbers = #tpu.dot_dimension_numbers<[1], [0], [0], [1], [0, 0, 1, 1], [], []>} : vector<16x32xbf16>, vector<32x32xbf16>, vector<16x32xf32> -> vector<16x32xf32>
    %c1 = arith.constant 1 : index
    %c0_8 = arith.constant 0 : index
    %11 = vector.load %arg2[%c1, %c0_8] : memref<3x32xf32, #tpu.memory_space<vmem>>, vector<1x32xf32>
    %12 = vector.broadcast %11 : vector<1x32xf32> to vector<16x32xf32>
    %13 = arith.addf %10, %12 : vector<16x32xf32>
    %14 = math.tanh %13 : vector<16x32xf32>
    %c0_9 = arith.constant 0 : index
    %c0_10 = arith.constant 0 : index
    %15 = vector.load %arg5[%c0_9, %c0_10] : memref<32x2xbf16, #tpu.memory_space<vmem>>, vector<32x2xbf16>
    %16 = arith.truncf %14 : vector<16x32xf32> to vector<16x32xbf16>
    %cst_11 = arith.constant dense<0.000000e+00> : vector<16x2xf32>
    %17 = tpu.matmul %16, %15, %cst_11 {dimension_numbers = #tpu.dot_dimension_numbers<[1], [0], [0], [1], [0, 0, 1, 1], [], []>} : vector<16x32xbf16>, vector<32x2xbf16>, vector<16x2xf32> -> vector<16x2xf32>
    %c2 = arith.constant 2 : index
    %c0_12 = arith.constant 0 : index
    %18 = vector.load %arg2[%c2, %c0_12] : memref<3x32xf32, #tpu.memory_space<vmem>>, vector<1x2xf32>
    %19 = vector.broadcast %18 : vector<1x2xf32> to vector<16x2xf32>
    %20 = arith.addf %17, %19 : vector<16x2xf32>
    %c0_13 = arith.constant 0 : index
    %c0_14 = arith.constant 0 : index
    %21 = vector.load %arg6[%c0_13, %c0_14] : memref<16x2xf32, #tpu.memory_space<vmem>>, vector<16x2xf32>
    tpu.vector_store %arg6[%c0_13, %c0_14], %20 {strides = array<i32>} : memref<16x2xf32, #tpu.memory_space<vmem>>, vector<16x2xf32>,
    return
  }
  func.func @transform_0(%arg0: i32) -> (i32, i32) {
    %c0_i32 = arith.constant 0 : i32
    %c0_i32_0 = arith.constant 0 : i32
    return %arg0, %c0_i32 : i32, i32
  }
  func.func @transform_1(%arg0: i32) -> (i32, i32) {
    %c0_i32 = arith.constant 0 : i32
    %c0_i32_0 = arith.constant 0 : i32
    %c0_i32_1 = arith.constant 0 : i32
    return %c0_i32, %c0_i32_0 : i32, i32
  }
  func.func @transform_2(%arg0: i32) -> (i32, i32) {
    %c0_i32 = arith.constant 0 : i32
    %c0_i32_0 = arith.constant 0 : i32
    %c0_i32_1 = arith.constant 0 : i32
    return %c0_i32, %c0_i32_0 : i32, i32
  }
  func.func @transform_3(%arg0: i32) -> (i32, i32) {
    %c0_i32 = arith.constant 0 : i32
    %c0_i32_0 = arith.constant 0 : i32
    %c0_i32_1 = arith.constant 0 : i32
    return %c0_i32, %c0_i32_0 : i32, i32
  }
  func.func @transform_4(%arg0: i32) -> (i32, i32) {
    %c0_i32 = arith.constant 0 : i32
    %c0_i32_0 = arith.constant 0 : i32
    %c0_i32_1 = arith.constant 0 : i32
    return %c0_i32, %c0_i32_0 : i32, i32
  }
  func.func @transform_5(%arg0: i32) -> (i32, i32) {
    %c0_i32 = arith.constant 0 : i32
    %c0_i32_0 = arith.constant 0 : i32
    return %arg0, %c0_i32 : i32, i32
  }
}

</mosaic_0001>

<llo_original>
// kernel: tpu_custom_call.1
$region0: #{tpu_custom_call.1}
  #allocation0 [shape = 'u32[]', space=smem, size = 0x4, offset = 0x4, fixed_abs, tag = 'smem constant byte address 0x4 - core index']
  #allocation1 [shape = 'u32[144,128]{1,0:T(1,128)}', space=vmem, size = 0x12000, scoped, tag = 'internal scratch']
  %s0 = inlined_call_operand.vmem [shape: f32[16,4], index: 0, kind: input, shape index: {}]
  %s1 = inlined_call_operand.vmem [shape: f32[3,32], index: 1, kind: input, shape index: {}]
  %s2 = inlined_call_operand.vmem [shape: bf16[4,32], index: 2, kind: input, shape index: {}]
  %s3 = inlined_call_operand.vmem [shape: bf16[32,32], index: 3, kind: input, shape index: {}]
  %s4 = inlined_call_operand.vmem [shape: bf16[32,2], index: 4, kind: input, shape index: {}]
  %s5 = inlined_call_operand.vmem [shape: f32[16,2], index: 5, kind: output, shape index: {}]
  %s6 = sld [smem:[#allocation0]]
  $region30: #{tpu_custom_call.1} parent=0
    _
  %s8 = ssub.s32 1, %s6
  %s9 = scalar_select 0, %s8, %s6
  // Predicated region
  $region2: #{tpu_custom_call.1} parent=0 // pred_check
    _
  $region3: #{tpu_custom_call.1} parent=0 // pred_check_branch
    %11 = sbr.rel (0) target = $region5
  $region4: #{tpu_custom_call.1} parent=0 // pred_region
    _
  $region5: #{tpu_custom_call.1} parent=0 // pred_fallthru
    _
  // Predicated region
  $region6: #{tpu_custom_call.1} parent=0 // pred_check
    _
  $region7: #{tpu_custom_call.1} parent=0 // pred_check_branch
    %13 = sbr.rel (0) target = $region9
  $region8: #{tpu_custom_call.1} parent=0 // pred_region
    _
  $region9: #{tpu_custom_call.1} parent=0 // pred_fallthru
    _
  // Predicated region
  $region10: #{tpu_custom_call.1} parent=0 // pred_check
    _
  $region11: #{tpu_custom_call.1} parent=0 // pred_check_branch
    %15 = sbr.rel (0) target = $region13
  $region12: #{tpu_custom_call.1} parent=0 // pred_region
    _
  $region13: #{tpu_custom_call.1} parent=0 // pred_fallthru
    _
  // Predicated region
  $region14: #{tpu_custom_call.1} parent=0 // pred_check
    _
  $region15: #{tpu_custom_call.1} parent=0 // pred_check_branch
    %17 = sbr.rel (0) target = $region17
  $region16: #{tpu_custom_call.1} parent=0 // pred_region
    _
  $region17: #{tpu_custom_call.1} parent=0 // pred_fallthru
    _
  // Predicated region
  $region18: #{tpu_custom_call.1} parent=0 // pred_check
    _
  $region19: #{tpu_custom_call.1} parent=0 // pred_check_branch
    %19 = sbr.rel (0) target = $region21
  $region20: #{tpu_custom_call.1} parent=0 // pred_region
    _
  $region21: #{tpu_custom_call.1} parent=0 // pred_fallthru
    _
  %v21 = vld [vmem:[%s0] sm:$0xff]
  %v22 = vld [vmem:[%s0 + $0x8] sm:$0xff]
  %v23 = vld [vmem:[%s2] sm:$0x3]
  %v24 = vpack.c.bf16 %v22, %v21
  %v25 = vld [vmem:[%s1] sm:$0x1]
  %v26 = vlaneseq
  %v27 = vshrl.u32 %v26, 7
  %v28 = vsub.s32 0, %v27
  %v29 = vrot.slane %v25, %v28
  %vm30 = vcmask 31744
  %v32 = vsel %vm30, %v24, 0
  %vm34 = vcmask 1041408
  %v36 = vsel %vm34, %v23, 0
  %38 = vmatprep.subr.bf16.mxu0 0
  %39 = vmatpush1.bf16.msra.mxu0 %v36
  %40 = vmatprep.subr.bf16.mxu0 0
  %41 = vmatpush1.bf16.msra.mxu0 0
  %42 = vmatprep.subr.bf16.mxu0 0
  %43 = vmatpush1.bf16.msra.mxu0 0
  %44 = vmatprep.subr.bf16.mxu0 0
  %45 = vmatpush1.bf16.msra.mxu0 0
  %46 = vmatprep.subr.bf16.mxu0 0
  %47 = vmatpush1.bf16.msra.mxu0 0
  %48 = vmatprep.subr.bf16.mxu0 0
  %49 = vmatpush1.bf16.msra.mxu0 0
  %50 = vmatprep.subr.bf16.mxu0 0
  %51 = vmatpush1.bf16.msra.mxu0 0
  %52 = vmatprep.subr.bf16.mxu0 0
  %53 = vmatpush1.bf16.msra.mxu0 0
  %54 = vmatprep.subr.bf16.mxu0 0
  %55 = vmatpush1.bf16.msra.mxu0 0
  %56 = vmatprep.subr.bf16.mxu0 0
  %57 = vmatpush1.bf16.msra.mxu0 0
  %58 = vmatprep.subr.bf16.mxu0 0
  %59 = vmatpush1.bf16.msra.mxu0 0
  %60 = vmatprep.subr.bf16.mxu0 0
  %61 = vmatpush1.bf16.msra.mxu0 0
  %62 = vmatprep.subr.bf16.mxu0 0
  %63 = vmatpush1.bf16.msra.mxu0 0
  %64 = vmatprep.subr.bf16.mxu0 0
  %65 = vmatpush1.bf16.msra.mxu0 0
  %66 = vmatprep.subr.bf16.mxu0 0
  %67 = vmatpush1.bf16.msra.mxu0 0
  %68 = vmatprep.subr.bf16.mxu0 0
  %69 = vmatpush1.bf16.msra.mxu0 0
  %70 = vmatprep.mubr.bf16.mxu0 0
  %71 = vmatmul.mubr.bf16.gmra.mrb[0].mxu0 %v32
  %v72 = vpop.f32.mrb[0].mxu0
  %v73 = vadd.f32 %v29, %v72
  %v74 = vpop.f32.mrb[0].mxu0
  %v75 = vpop.f32.mrb[0].mxu0
  %v76 = vadd.f32 %v29, %v75
  %v77 = vpop.f32.mrb[0].mxu0
  %78 = vdwg.mxu0
  %v79 = vtanh.pop %v73
  %v80 = vtanh.pop %v76
  %v81 = vld [vmem:[%s3] sm:$0xf]
  %v82 = vld [vmem:[%s3 + $0x4] sm:$0xf]
  %v83 = vld [vmem:[%s3 + $0x8] sm:$0xf]
  %v84 = vld [vmem:[%s3 + $0xc] sm:$0xf]
  %v85 = vpack.c.bf16 %v80, %v79
  %v86 = vld [vmem:[%s1 + $0x1] sm:$0x1]
  %v87 = vlaneseq
  %v88 = vshrl.u32 %v87, 7
  %v89 = vsub.s32 0, %v88
  %v90 = vrot.slane %v86, %v89
  %v95 = vunpack.c.l.b16 %v81
  %v96 = vunpack.c.l.b16 %v82
  %v97 = vunpack.c.l.b16 %v83
  %v98 = vunpack.c.l.b16 %v84
  %v99 = vpack.c.b16 %v96, %v95
  %v100 = vpack.c.b16 %v98, %v97
  %vm103 = vcmask 261120
  %v105 = vsel %vm103, %v85, 0
  %107 = vmatprep.subr.bf16.mxu0 0
  %108 = vmatpush1.bf16.msra.mxu0 %v99
  %109 = vmatprep.subr.bf16.mxu0 0
  %110 = vmatpush1.bf16.msra.mxu0 %v100
  %111 = vmatprep.subr.bf16.mxu0 0
  %112 = vmatpush1.bf16.msra.mxu0 0
  %113 = vmatprep.subr.bf16.mxu0 0
  %114 = vmatpush1.bf16.msra.mxu0 0
  %115 = vmatprep.subr.bf16.mxu0 0
  %116 = vmatpush1.bf16.msra.mxu0 0
  %117 = vmatprep.subr.bf16.mxu0 0
  %118 = vmatpush1.bf16.msra.mxu0 0
  %119 = vmatprep.subr.bf16.mxu0 0
  %120 = vmatpush1.bf16.msra.mxu0 0
  %121 = vmatprep.subr.bf16.mxu0 0
  %122 = vmatpush1.bf16.msra.mxu0 0
  %123 = vmatprep.subr.bf16.mxu0 0
  %124 = vmatpush1.bf16.msra.mxu0 0
  %125 = vmatprep.subr.bf16.mxu0 0
  %126 = vmatpush1.bf16.msra.mxu0 0
  %127 = vmatprep.subr.bf16.mxu0 0
  %128 = vmatpush1.bf16.msra.mxu0 0
  %129 = vmatprep.subr.bf16.mxu0 0
  %130 = vmatpush1.bf16.msra.mxu0 0
  %131 = vmatprep.subr.bf16.mxu0 0
  %132 = vmatpush1.bf16.msra.mxu0 0
  %133 = vmatprep.subr.bf16.mxu0 0
  %134 = vmatpush1.bf16.msra.mxu0 0
  %135 = vmatprep.subr.bf16.mxu0 0
  %136 = vmatpush1.bf16.msra.mxu0 0
  %137 = vmatprep.subr.bf16.mxu0 0
  %138 = vmatpush1.bf16.msra.mxu0 0
  %139 = vmatprep.mubr.bf16.mxu0 0
  %140 = vmatmul.mubr.bf16.gmra.mrb[0].mxu0 %v105
  %v141 = vpop.f32.mrb[0].mxu0
  %v142 = vadd.f32 %v90, %v141
  %v143 = vpop.f32.mrb[0].mxu0
  %v144 = vpop.f32.mrb[0].mxu0
  %v145 = vadd.f32 %v90, %v144
  %v146 = vpop.f32.mrb[0].mxu0
  %147 = vdwg.mxu0
  %v148 = vtanh.pop %v142
  %v149 = vtanh.pop %v145
  %v150 = vld [vmem:[%s4] sm:$0xf]
  %v151 = vld [vmem:[%s4 + $0x4] sm:$0xf]
  %v152 = vld [vmem:[%s4 + $0x8] sm:$0xf]
  %v153 = vld [vmem:[%s4 + $0xc] sm:$0xf]
  %v154 = vpack.c.bf16 %v149, %v148
  %v155 = vld [vmem:[%s1 + $0x2] sm:$0x1]
  %v156 = vlaneseq
  %v157 = vshrl.u32 %v156, 7
  %v158 = vsub.s32 0, %v157
  %v159 = vrot.slane %v155, %v158
  %v164 = vunpack.c.l.b16 %v150
  %v165 = vunpack.c.l.b16 %v151
  %v166 = vunpack.c.l.b16 %v152
  %v167 = vunpack.c.l.b16 %v153
  %v168 = vpack.c.b16 %v165, %v164
  %v169 = vpack.c.b16 %v167, %v166
  %v173 = vsel %vm103, %v154, 0
  %175 = vmatprep.subr.bf16.mxu0 0
  %176 = vmatpush1.bf16.msra.mxu0 %v168
  %177 = vmatprep.subr.bf16.mxu0 0
  %178 = vmatpush1.bf16.msra.mxu0 %v169
  %179 = vmatprep.subr.bf16.mxu0 0
  %180 = vmatpush1.bf16.msra.mxu0 0
  %181 = vmatprep.subr.bf16.mxu0 0
  %182 = vmatpush1.bf16.msra.mxu0 0
  %183 = vmatprep.subr.bf16.mxu0 0
  %184 = vmatpush1.bf16.msra.mxu0 0
  %185 = vmatprep.subr.bf16.mxu0 0
  %186 = vmatpush1.bf16.msra.mxu0 0
  %187 = vmatprep.subr.bf16.mxu0 0
  %188 = vmatpush1.bf16.msra.mxu0 0
  %189 = vmatprep.subr.bf16.mxu0 0
  %190 = vmatpush1.bf16.msra.mxu0 0
  %191 = vmatprep.subr.bf16.mxu0 0
  %192 = vmatpush1.bf16.msra.mxu0 0
  %193 = vmatprep.subr.bf16.mxu0 0
  %194 = vmatpush1.bf16.msra.mxu0 0
  %195 = vmatprep.subr.bf16.mxu0 0
  %196 = vmatpush1.bf16.msra.mxu0 0
  %197 = vmatprep.subr.bf16.mxu0 0
  %198 = vmatpush1.bf16.msra.mxu0 0
  %199 = vmatprep.subr.bf16.mxu0 0
  %200 = vmatpush1.bf16.msra.mxu0 0
  %201 = vmatprep.subr.bf16.mxu0 0
  %202 = vmatpush1.bf16.msra.mxu0 0
  %203 = vmatprep.subr.bf16.mxu0 0
  %204 = vmatpush1.bf16.msra.mxu0 0
  %205 = vmatprep.subr.bf16.mxu0 0
  %206 = vmatpush1.bf16.msra.mxu0 0
  %207 = vmatprep.mubr.bf16.mxu0 0
  %208 = vmatmul.mubr.bf16.gmra.mrb[0].mxu0 %v173
  %v209 = vpop.f32.mrb[0].mxu0
  %v210 = vadd.f32 %v159, %v209
  %v211 = vpop.f32.mrb[0].mxu0
  %v212 = vpop.f32.mrb[0].mxu0
  %v213 = vadd.f32 %v159, %v212
  %v214 = vpop.f32.mrb[0].mxu0
  %215 = vdwg.mxu0
  %vm216 = vcmask 15360
  %217 = vst.msk [vmem:[%s5] sm:$0xff] %vm216, %v210
  %218 = vst.msk [vmem:[%s5 + $0x8] sm:$0xff] %vm216, %v213
  // Predicated region
  $region22: #{tpu_custom_call.1} parent=0 // pred_check
    _
  $region23: #{tpu_custom_call.1} parent=0 // pred_check_branch
    %220 = sbr.rel (0) target = $region25
  $region24: #{tpu_custom_call.1} parent=0 // pred_region
    _
  $region25: #{tpu_custom_call.1} parent=0 // pred_fallthru
    _
  // Predicated region
  $region26: #{tpu_custom_call.1} parent=0 // pred_check
    _
  $region27: #{tpu_custom_call.1} parent=0 // pred_check_branch
    %222 = sbr.rel (0) target = $region29
  $region28: #{tpu_custom_call.1} parent=0 // pred_region
    _
  $region29: #{tpu_custom_call.1} parent=0 // pred_fallthru
    _

</llo_original>
